<compile_context>
chip_gen: v7x
topology: tpu7x:2x2x1
jax: 0.10.0
libtpu: 0.0.40
codegen_flags: <defaults>
</compile_context>

<pallas_src>
import functools

import jax
import jax.numpy as jnp
from jax.experimental import pallas as pl
from jax.experimental.pallas import tpu as pltpu


_LANES = 128
_SUBLANES = 8
# (2048, 128) f32 block = 1 MiB per buffer -> ~4 MiB with double-buffered
# in + out. Comfortably inside the default scoped VMEM on v5e/v6e/v7x and
# big enough to sit at the HBM roofline (per the measured tile-size sweep).
_TILE_ROWS = 2048


# ----------------------------- kernel -------------------------------------- #

def _reverse_grad_kernel(g_ref, o_ref, *, neg_alpha):
    # Backward hot path: scale the cotangent tile by -alpha (baked-in constant),
    # multiplying in the native dtype (bf16 runs natively on v6e/v7x VPUs).
    o_ref[...] = g_ref[...] * jnp.asarray(neg_alpha, dtype=o_ref.dtype)


# --------------------------- pallas wrapper --------------------------------- #

def _reverse_grad_pallas(alpha, g):
    """Compute g * (-alpha) via a tiled, pipelined Pallas kernel."""
    orig_shape = g.shape
    orig_dtype = g.dtype

    flat = g.reshape(-1)
    n = flat.shape[0]
    chunk = _LANES * _SUBLANES
    padded = ((n + chunk - 1) // chunk) * chunk
    needs_pad = padded != n
    if needs_pad:
        # Only materialize a pad when the element count is not a multiple of
        # 8*128 (rare for real activation shapes).
        flat = jnp.pad(flat, (0, padded - n))

    rows = padded // _LANES
    g2d = flat.reshape(rows, _LANES)

    # Block rows: full array if small, otherwise a ~1 MiB lane-dense tile.
    tile_rows = min(_TILE_ROWS, rows)
    grid = (pl.cdiv(rows, tile_rows),)

    kernel = functools.partial(_reverse_grad_kernel, neg_alpha=-float(alpha))

    o2d = pl.pallas_call(
        kernel,
        out_shape=jax.ShapeDtypeStruct((rows, _LANES), orig_dtype),
        grid_spec=pl.GridSpec(
            grid=grid,
            in_specs=[pl.BlockSpec((tile_rows, _LANES), lambda i: (i, 0))],
            out_specs=pl.BlockSpec((tile_rows, _LANES), lambda i: (i, 0)),
        ),
        # Donate the cotangent buffer: single read-modify-write HBM stream.
        input_output_aliases={0: 0},
        # Row tiles are independent -> shard across both TCs on v7x.
        compiler_params=pltpu.CompilerParams(
            dimension_semantics=("parallel",),
        ),
    )(g2d)

    if needs_pad:
        return o2d.reshape(-1)[:n].reshape(orig_shape)
    return o2d.reshape(orig_shape)


# ------------------------- gradient reversal op ----------------------------- #

@functools.partial(jax.custom_vjp, nondiff_argnums=(1,))
def gradient_reversal(x, alpha=1.0):
    # Forward is a mathematical identity: no kernel, no copy.
    return x


def _grl_fwd(x, alpha):
    return x, None


def _grl_bwd(alpha, _, g):
    return (_reverse_grad_pallas(alpha, g),)


gradient_reversal.defvjp(_grl_fwd, _grl_bwd)


class GradientReversalLayer:
    """JAX/Pallas equivalent of the PyTorch GradientReversalLayer (no params)."""

    def __init__(self, alpha=1.0):
        self._alpha = float(alpha)

    def __call__(self, x):
        return gradient_reversal(x, self._alpha)


# -------------------------------- main ------------------------------------- #

if __name__ == "__main__":
    key = jax.random.PRNGKey(0)
    x = jax.random.normal(key, (2, 4, 16, 16), dtype=jnp.float32)  # NCHW

    layer = GradientReversalLayer(alpha=1.0)

    # Forward: exact identity.
    y = layer(x)
    jax.block_until_ready(y)
    assert y.shape == x.shape and y.dtype == x.dtype
    assert bool(jnp.allclose(y, x)), "forward is not identity"

    # Backward sanity: grad of sum(y) wrt x should be -alpha everywhere.
    g = jax.grad(lambda z: jnp.sum(layer(z)))(x)
    jax.block_until_ready(g)
    assert g.shape == x.shape and g.dtype == x.dtype
    assert bool(jnp.allclose(g, -1.0 * jnp.ones_like(x))), "gradient not reversed"

    # Backward with a non-uniform cotangent: grad of sum(w * y) == -alpha * w.
    w = jax.random.normal(jax.random.PRNGKey(1), x.shape, dtype=jnp.float32)
    g2 = jax.grad(lambda z: jnp.sum(w * layer(z)))(x)
    jax.block_until_ready(g2)
    assert bool(jnp.allclose(g2, -1.0 * w, rtol=1e-6, atol=1e-6)), "reversed grad mismatch"

    print("KERNEL_OK")
</pallas_src>

<mosaic_0001>
module attributes {stable_mosaic.version = 11 : i64} {
  func.func @_reverse_grad_kernel(%arg0: i32, %arg1: memref<16x128xf32, #tpu.memory_space<vmem>>, %arg2: memref<16x128xf32, #tpu.memory_space<vmem>>) attributes {dimension_semantics = [#tpu.dimension_semantics<parallel>], iteration_bounds = array<i64: 1>, scalar_prefetch = 0 : i64, scratch_operands = 0 : i64, tpu.core_type = #tpu.core_type<tc>, window_params = [{transform_indices = @transform_0, window_bounds = array<i64: 16, 128>}, {transform_indices = @transform_1, window_bounds = array<i64: 16, 128>}]} {
    %c0 = arith.constant 0 : index
    %c0_0 = arith.constant 0 : index
    %0 = vector.load %arg1[%c0, %c0_0] : memref<16x128xf32, #tpu.memory_space<vmem>>, vector<16x128xf32>
    %cst = arith.constant -1.000000e+00 : f32
    %1 = vector.broadcast %cst : f32 to vector<16x128xf32>
    %2 = arith.mulf %0, %1 : vector<16x128xf32>
    %c0_1 = arith.constant 0 : index
    %c0_2 = arith.constant 0 : index
    %3 = vector.load %arg2[%c0_1, %c0_2] : memref<16x128xf32, #tpu.memory_space<vmem>>, vector<16x128xf32>
    tpu.vector_store %arg2[%c0_1, %c0_2], %2 {strides = array<i32>} : memref<16x128xf32, #tpu.memory_space<vmem>>, vector<16x128xf32>,
    return
  }
  func.func @transform_0(%arg0: i32) -> (i32, i32) {
    %c0_i32 = arith.constant 0 : i32
    %c0_i32_0 = arith.constant 0 : i32
    return %arg0, %c0_i32 : i32, i32
  }
  func.func @transform_1(%arg0: i32) -> (i32, i32) {
    %c0_i32 = arith.constant 0 : i32
    %c0_i32_0 = arith.constant 0 : i32
    return %arg0, %c0_i32 : i32, i32
  }
}

</mosaic_0001>

<llo_original>
// kernel: tpu_custom_call.1
$region0: #{tpu_custom_call.1}
  #allocation0 [shape = 'u32[]', space=smem, size = 0x4, offset = 0x4, fixed_abs, tag = 'smem constant byte address 0x4 - core index']
  #allocation1 [shape = 'u32[144,128]{1,0:T(1,128)}', space=vmem, size = 0x12000, scoped, tag = 'internal scratch']
  %s0 = inlined_call_operand.hbm [shape: f32[16,128], index: 0, kind: input, shape index: {}, may-alias: {0,1}]
  %s1 = inlined_call_operand.hbm [shape: f32[16,128], index: 1, kind: output, shape index: {}, may-alias: {0,1}]
  %s2 = sld [smem:[#allocation0]]
  $region18: #{tpu_custom_call.1} parent=0
    _
  %s4 = ssub.s32 1, %s2
  %s5 = scalar_select 0, %s4, %s2
  $region1: #{tpu_custom_call.1} parent=0
    #allocation2 [shape = 'u8[8192]{0}', space=vmem, size = 0x2000, scoped, tag = 'input window, operand 0, single buffered']
    #allocation3 [shape = 's32[1]{0}', space=sflag, size = 0x4, scoped, tag = 'scoped memory for tpu_custom_call.1']
    #allocation4 [shape = 's32[1]{0}', space=sflag, size = 0x4, scoped, tag = 'scoped memory for tpu_custom_call.1']
    #allocation5 [shape = 'u8[8192]{0}', space=vmem, size = 0x2000, scoped, tag = 'output window, operand 0, single buffered']
    %6 = vsyncpa [#allocation3], 0
    %7 = vsyncpa [#allocation4], 0
    // Predicated region
    $region2: #{tpu_custom_call.1} parent=1 // pred_check
      _
    $region3: #{tpu_custom_call.1} parent=1 // pred_check_branch
      %9 = sbr.rel (0) target = $region5
    $region4: #{tpu_custom_call.1} parent=1 // pred_region
      %s11 = ssub.s32 256, 256
      %12 = vsyncadd [#allocation3], %s11
      %s13 = sshll.u32 [#allocation2], 4
      %s14 = int_to_ptr.vmem [resolvable:$true] %s13
      %19 = dma.hbm_to_vmem [thread:$0]  %s0, 256, %s14, [#allocation3], 128, 128, 8
    $region5: #{tpu_custom_call.1} parent=1 // pred_fallthru
      _
    // Predicated region
    $region6: #{tpu_custom_call.1} parent=1 // pred_check
      _
    $region7: #{tpu_custom_call.1} parent=1 // pred_check_branch
      %21 = sbr.rel (0) target = $region9
    $region8: #{tpu_custom_call.1} parent=1 // pred_region
      %22 = dma.done [#allocation3], 256
    $region9: #{tpu_custom_call.1} parent=1 // pred_fallthru
      _
    %v23 = vld [vmem:[#allocation2] sm:$0xff]
    %v24 = vld [vmem:[#allocation2 + $0x8] sm:$0xff]
    %v25 = vmul.f32 %v23, -1.0
    %v26 = vmul.f32 %v24, -1.0
    %27 = vst [vmem:[#allocation5] sm:$0xff] %v25
    %28 = vst [vmem:[#allocation5 + $0x8] sm:$0xff] %v26
    // Predicated region
    $region10: #{tpu_custom_call.1} parent=1 // pred_check
      _
    $region11: #{tpu_custom_call.1} parent=1 // pred_check_branch
      %30 = sbr.rel (0) target = $region13
    $region12: #{tpu_custom_call.1} parent=1 // pred_region
      %s32 = ssub.s32 256, 256
      %33 = vsyncadd [#allocation4], %s32
      %s34 = sshll.u32 [#allocation5], 4
      %s35 = int_to_ptr.vmem [resolvable:$true] %s34
      %40 = dma.vmem_to_hbm [thread:$0]  %s35, 256, %s1, [#allocation4], 128, 128, 8
    $region13: #{tpu_custom_call.1} parent=1 // pred_fallthru
      _
    // Predicated region
    $region14: #{tpu_custom_call.1} parent=1 // pred_check
      _
    $region15: #{tpu_custom_call.1} parent=1 // pred_check_branch
      %42 = sbr.rel (0) target = $region17
    $region16: #{tpu_custom_call.1} parent=1 // pred_region
      %43 = dma.done [#allocation4], 256
    $region17: #{tpu_custom_call.1} parent=1 // pred_fallthru
      _
    %44 = vsyncpa [#allocation3], 1
    %45 = vsyncpa [#allocation4], 1

</llo_original>
